<compile_context>
chip_gen: v5e
topology: v5e:2x2
jax: 0.10.0
libtpu: 0.0.40
codegen_flags: <defaults>
</compile_context>

<pallas_src>
import functools

import jax
import jax.numpy as jnp
from jax import lax
from jax.experimental import pallas as pl
from jax.experimental.pallas import tpu as pltpu


# ---------------------------------------------------------------------------
# Kernel A: per-metapath GAT projection (single fused MXU matmul)
#   proj = h @ [W | W@attn_r | W@attn_l]  ->  ft = proj[:, :HD], er, el
# ---------------------------------------------------------------------------

def _gat_proj_kernel(h_ref, wcat_ref, ft_ref, er_ref, el_ref, *, HD, H):
    proj = jnp.dot(h_ref[...], wcat_ref[0], preferred_element_type=jnp.float32)
    ft_ref[0] = proj[:, :HD].astype(ft_ref.dtype)       # (TN, HD)
    er_ref[0] = proj[:, HD:HD + H]                       # (TN, H)  dst logit part
    el_ref[0] = proj[:, HD + H:HD + 2 * H]               # (TN, H)  src logit part


def gat_project(x, wcat, M, N, H, D, compute_dtype, tile_n=256):
    F_in = x.shape[1]
    HD = H * D
    TN = min(tile_n, N)
    assert N % TN == 0
    grid = (M, N // TN)
    kern = functools.partial(_gat_proj_kernel, HD=HD, H=H)
    return pl.pallas_call(
        kern,
        grid_spec=pltpu.PrefetchScalarGridSpec(
            num_scalar_prefetch=0,
            grid=grid,
            in_specs=[
                pl.BlockSpec((TN, F_in), lambda m, i: (i, 0)),                # h tile
                pl.BlockSpec((1, F_in, HD + 2 * H), lambda m, i: (m, 0, 0)),  # fused weights
            ],
            out_specs=[
                pl.BlockSpec((1, TN, HD), lambda m, i: (m, i, 0)),            # ft
                pl.BlockSpec((1, TN, H), lambda m, i: (m, i, 0)),             # er
                pl.BlockSpec((1, TN, H), lambda m, i: (m, i, 0)),             # el
            ],
        ),
        out_shape=(
            jax.ShapeDtypeStruct((M, N, HD), compute_dtype),
            jax.ShapeDtypeStruct((M, N, H), jnp.float32),
            jax.ShapeDtypeStruct((M, N, H), jnp.float32),
        ),
        compiler_params=pltpu.CompilerParams(
            dimension_semantics=("parallel", "parallel"),
            vmem_limit_bytes=32 * 1024 * 1024,
        ),
    )(x.astype(compute_dtype), wcat.astype(compute_dtype))


# ---------------------------------------------------------------------------
# Kernel B: per-metapath edge-softmax aggregation.
#   Full src axis resident per metapath (no online-softmax correction path);
#   grid is (metapath, dst tile), both parallel.
# ---------------------------------------------------------------------------

def _gat_attn_kernel(adj_ref, ft_ref, er_ref, elt_ref, b_ref, z_ref, acc_ref, *, H, D):
    mask = adj_ref[0] != 0                        # (TD, N) bool (int8 adjacency, no cast)
    er = er_ref[0]                                # (TD, H)  f32, dst logit part
    elt = elt_ref[0]                              # (H, N)   f32, src logit part (resident)

    for h in range(H):
        e = er[:, h:h + 1] + elt[h:h + 1, :]                  # (TD, N)
        e = jnp.where(e >= 0.0, e, 0.2 * e)                   # LeakyReLU(0.2)
        e = jnp.where(mask, e, -1e30)                         # mask non-edges
        m = jnp.max(e, axis=1, keepdims=True)                 # (TD, 1)
        p = jnp.where(mask, jnp.exp(e - m), 0.0)              # guard fully-masked rows
        s = jnp.sum(p, axis=1, keepdims=True)                 # (TD, 1)
        inv = pl.reciprocal(jnp.maximum(s, 1e-30), approx=True)
        o = jnp.dot(p.astype(ft_ref.dtype), ft_ref[0, :, h * D:(h + 1) * D],
                    preferred_element_type=jnp.float32)       # (TD, D), K = N deep
        acc_ref[:, h * D:(h + 1) * D] = o * inv               # direct slice store (no concat)

    out = acc_ref[...] + b_ref[0]                                             # + GATConv bias
    z_ref[0] = jnp.where(out > 0.0, out, jnp.exp(jnp.minimum(out, 0.0)) - 1.0)  # ELU


def gat_attention(adj_i8, ft, er, elt, bias, M, N, H, D, tile_d=128):
    HD = H * D
    TD = min(tile_d, N)
    assert N % TD == 0
    grid = (M, N // TD)
    kern = functools.partial(_gat_attn_kernel, H=H, D=D)
    cost = pl.CostEstimate(
        flops=int(2 * M * N * N * HD + 10 * M * N * N * H),
        transcendentals=int(M * N * N * H),
        bytes_accessed=int(M * N * N                                  # adjacency, int8, once
                           + M * N * HD * (ft.dtype.itemsize + 4)     # ft once/metapath + z out
                           + 2 * M * N * H * 4),
    )
    # Resident ft/elT + double-buffered tiles; for this problem this resolves to 32 MiB.
    vmem_need = (2 * (TD * N + TD * (HD + H) * 4 + TD * HD * 4)
                 + N * HD * ft.dtype.itemsize + H * N * 4
                 + TD * HD * 4 + (2 << 20))
    vmem_limit = min(112 * 1024 * 1024, max(32 * 1024 * 1024, int(1.2 * vmem_need)))
    return pl.pallas_call(
        kern,
        grid_spec=pltpu.PrefetchScalarGridSpec(
            num_scalar_prefetch=0,
            grid=grid,
            in_specs=[
                pl.BlockSpec((1, TD, N), lambda m, i: (m, i, 0)),   # adjacency tile (int8)
                pl.BlockSpec((1, N, HD), lambda m, i: (m, 0, 0)),   # ft  resident per metapath
                pl.BlockSpec((1, TD, H), lambda m, i: (m, i, 0)),   # er  (dst rows)
                pl.BlockSpec((1, H, N), lambda m, i: (m, 0, 0)),    # elT resident per metapath
                pl.BlockSpec((1, 1, HD), lambda m, i: (m, 0, 0)),   # bias
            ],
            out_specs=pl.BlockSpec((1, TD, HD), lambda m, i: (m, i, 0)),
            scratch_shapes=[pltpu.VMEM((TD, HD), jnp.float32)],     # per-dst-tile accumulator
        ),
        out_shape=jax.ShapeDtypeStruct((M, N, HD), jnp.float32),
        compiler_params=pltpu.CompilerParams(
            dimension_semantics=("parallel", "parallel"),
            vmem_limit_bytes=vmem_limit,
        ),
        cost_estimate=cost,
    )(adj_i8, ft, er, elt, bias)


# ---------------------------------------------------------------------------
# Kernel C: semantic attention (+ optional fused predict), tiled over node tiles.
#   Phase 1: per-metapath mean logit w_m accumulated across node tiles.
#   Phase 2: softmax over metapaths, mix, optional predict linear.
# ---------------------------------------------------------------------------

def _sem_logit_kernel(z_ref, w1_ref, b1_ref, w2_ref, w_ref, *, M, inv_n):
    @pl.when(pl.program_id(0) == 0)
    def _():
        w_ref[...] = jnp.zeros_like(w_ref)

    lane = lax.broadcasted_iota(jnp.int32, w_ref.shape, 1)    # (1, 128)
    w1 = w1_ref[...]
    b1 = b1_ref[...]
    w2 = w2_ref[...]                                          # (1, S) row
    acc = w_ref[...]
    for m in range(M):
        pm = jnp.tanh(jnp.dot(z_ref[m], w1, preferred_element_type=jnp.float32) + b1)
        # width-1 output matmul replaced by VPU multiply + reduction
        val = jnp.sum(pm * w2) * inv_n
        acc = acc + jnp.where(lane == m, val, 0.0)
    w_ref[...] = acc


def _semantic_mix(w_vec, z_ref, M):
    lane = lax.broadcasted_iota(jnp.int32, w_vec.shape, 1)
    valid = lane < M
    mx = jnp.max(jnp.where(valid, w_vec, -1e30))
    ex = jnp.where(valid, jnp.exp(w_vec - mx), 0.0)
    inv_den = 1.0 / jnp.sum(ex)
    mixed = None
    for m in range(M):
        beta_m = jnp.sum(jnp.where(lane == m, ex, 0.0)) * inv_den
        contrib = beta_m * z_ref[m]
        mixed = contrib if mixed is None else mixed + contrib
    return mixed


def _sem_mix_kernel(w_ref, z_ref, out_ref, *, M):
    out_ref[...] = _semantic_mix(w_ref[...], z_ref, M)


def _sem_mix_predict_kernel(w_ref, z_ref, wp_ref, bp_ref, out_ref, *, M):
    mixed = _semantic_mix(w_ref[...], z_ref, M)
    out_ref[...] = (jnp.dot(mixed, wp_ref[...], preferred_element_type=jnp.float32)
                    + bp_ref[...])


def semantic_attention(z, sem, M, N, HD, predict=None, tile_n=256):
    assert M <= 128
    TN = min(tile_n, N)
    assert N % TN == 0
    ntiles = N // TN
    S = sem["W1"].shape[1]

    # Phase 1: per-metapath mean logits (output block acts as the accumulator).
    w = pl.pallas_call(
        functools.partial(_sem_logit_kernel, M=M, inv_n=1.0 / N),
        grid_spec=pltpu.PrefetchScalarGridSpec(
            num_scalar_prefetch=0,
            grid=(ntiles,),
            in_specs=[
                pl.BlockSpec((M, TN, HD), lambda i: (0, i, 0)),
                pl.BlockSpec((HD, S), lambda i: (0, 0)),
                pl.BlockSpec((1, S), lambda i: (0, 0)),
                pl.BlockSpec((1, S), lambda i: (0, 0)),
            ],
            out_specs=pl.BlockSpec((1, 128), lambda i: (0, 0)),
        ),
        out_shape=jax.ShapeDtypeStruct((1, 128), jnp.float32),
        compiler_params=pltpu.CompilerParams(dimension_semantics=("arbitrary",)),
    )(z, sem["W1"], sem["b1"], sem["W2row"])

    # Phase 2: softmax over metapaths + mix (+ fused predict on the last layer).
    if predict is None:
        out_dim = HD
        kern = functools.partial(_sem_mix_kernel, M=M)
        extra_in, extra_specs = (), ()
    else:
        out_dim = predict["W"].shape[1]
        kern = functools.partial(_sem_mix_predict_kernel, M=M)
        extra_in = (predict["W"], predict["b"])
        extra_specs = (pl.BlockSpec((HD, out_dim), lambda i: (0, 0)),
                       pl.BlockSpec((1, out_dim), lambda i: (0, 0)))

    return pl.pallas_call(
        kern,
        grid_spec=pltpu.PrefetchScalarGridSpec(
            num_scalar_prefetch=0,
            grid=(ntiles,),
            in_specs=[pl.BlockSpec((1, 128), lambda i: (0, 0)),
                      pl.BlockSpec((M, TN, HD), lambda i: (0, i, 0)),
                      *extra_specs],
            out_specs=pl.BlockSpec((TN, out_dim), lambda i: (i, 0)),
        ),
        out_shape=jax.ShapeDtypeStruct((N, out_dim), jnp.float32),
        compiler_params=pltpu.CompilerParams(dimension_semantics=("parallel",)),
    )(w, z, *extra_in)


# ---------------------------------------------------------------------------
# Full forward
# ---------------------------------------------------------------------------

def han_forward(adjs, h, params, num_heads, hidden_size, compute_dtype=jnp.bfloat16):
    """adjs: (M, N, N) {0,1}; h: (N, in_size). Returns (N, out_size)."""
    M, N, _ = adjs.shape
    adj_i8 = (adjs != 0).astype(jnp.int8)     # adjacency stream halved vs bf16, read once
    n_layers = len(params["layers"])
    x = h
    for li, lp in enumerate(params["layers"]):
        H = num_heads[li]
        D = hidden_size
        HD = H * D
        ft, er, el = gat_project(x, lp["Wcat"], M, N, H, D, compute_dtype)
        # Tiny (M, N, H)->(M, H, N) transpose stays in XLA (a few KB); safer than an
        # in-kernel narrow-tile transpose and far off the critical path.
        elt = jnp.swapaxes(el, 1, 2)
        z = gat_attention(adj_i8, ft, er, elt, lp["bias"], M, N, H, D)
        pred = params["predict"] if li == n_layers - 1 else None
        x = semantic_attention(z, lp["sem"], M, N, HD, predict=pred)
    return x


# ---------------------------------------------------------------------------
# Pure-JAX reference (f32 everywhere) for correctness check
# ---------------------------------------------------------------------------

def _gat_ref(h, adj, p_raw, H, D):
    N = h.shape[0]
    ft = h @ p_raw["W"]
    ft3 = ft.reshape(N, H, D)
    el = (ft3 * p_raw["attn_l"]).sum(-1)
    er = (ft3 * p_raw["attn_r"]).sum(-1)
    e = er[:, None, :] + el[None, :, :]
    e = jnp.where(e >= 0.0, e, 0.2 * e)
    mask = (adj > 0)[:, :, None]
    e_m = jnp.where(mask, e, -1e30)
    m = e_m.max(1, keepdims=True)
    p = jnp.where(mask, jnp.exp(e_m - m), 0.0)
    s = p.sum(1, keepdims=True)
    alpha = p / jnp.maximum(s, 1e-30)
    out = jnp.einsum('ijh,jhd->ihd', alpha, ft3)
    out = out + p_raw["bias"].reshape(1, H, D)
    out = jnp.where(out > 0.0, out, jnp.exp(jnp.minimum(out, 0.0)) - 1.0)
    return out.reshape(N, H * D)


def _han_ref(adjs, h, params, num_heads, hidden_size):
    M, N, _ = adjs.shape
    for li, lp in enumerate(params["layers"]):
        H, D = num_heads[li], hidden_size
        embeds = jnp.stack(
            [_gat_ref(h, adjs[m], lp["gat_raw"][m], H, D) for m in range(M)], axis=1)
        sp = lp["sem"]
        proj = jnp.tanh(embeds @ sp["W1"] + sp["b1"]) @ sp["W2"]
        w = proj.mean(0)
        beta = jax.nn.softmax(w, axis=0)
        h = (beta[None] * embeds).sum(1)
    return h @ params["predict"]["W"] + params["predict"]["b"]


# ---------------------------------------------------------------------------
# Deterministic parameter construction (attention vectors folded into W)
# ---------------------------------------------------------------------------

def make_params(key, M, layer_in_sizes, hidden_size, num_heads, out_size):
    params = {"layers": []}
    for li, in_size in enumerate(layer_in_sizes):
        H, D = num_heads[li], hidden_size
        HD = H * D
        Wcats, biases, gat_raw = [], [], []
        for _ in range(M):
            key, k1, k2, k3, k4 = jax.random.split(key, 5)
            W = jax.random.normal(k1, (in_size, HD), jnp.float32) * 0.1
            attn_l = jax.random.normal(k2, (1, H, D), jnp.float32) * 0.1
            attn_r = jax.random.normal(k3, (1, H, D), jnp.float32) * 0.1
            bias = jax.random.normal(k4, (HD,), jnp.float32) * 0.1
            # Fold per-head attention vectors into the projection:
            #   er = (h @ W)·attn_r == h @ Wer,  el likewise.
            W3 = W.reshape(in_size, H, D)
            Wer = jnp.einsum('fhd,hd->fh', W3, attn_r[0])
            Wel = jnp.einsum('fhd,hd->fh', W3, attn_l[0])
            Wcats.append(jnp.concatenate([W, Wer, Wel], axis=1))   # (in, HD + 2H)
            biases.append(bias.reshape(1, HD))
            gat_raw.append({"W": W, "attn_l": attn_l, "attn_r": attn_r, "bias": bias})
        key, k1, k2, k3 = jax.random.split(key, 4)
        W1 = jax.random.normal(k1, (HD, 128), jnp.float32) * 0.1
        b1 = jax.random.normal(k2, (128,), jnp.float32) * 0.1
        W2 = jax.random.normal(k3, (128, 1), jnp.float32) * 0.1
        sem = {"W1": W1, "b1": b1.reshape(1, 128),
               "W2": W2, "W2row": W2.reshape(1, 128)}
        params["layers"].append({
            "Wcat": jnp.stack(Wcats),     # (M, in, HD + 2H)
            "bias": jnp.stack(biases),    # (M, 1, HD)
            "sem": sem,
            "gat_raw": gat_raw,
        })
    key, k1, k2 = jax.random.split(key, 3)
    last_dim = hidden_size * num_heads[-1]
    params["predict"] = {
        "W": jax.random.normal(k1, (last_dim, out_size), jnp.float32) * 0.1,
        "b": (jax.random.normal(k2, (out_size,), jnp.float32) * 0.1).reshape(1, out_size),
    }
    return params


# ---------------------------------------------------------------------------
# Main
# ---------------------------------------------------------------------------

if __name__ == "__main__":
    key = jax.random.PRNGKey(0)

    # Small HAN config: 2 metapaths, 256 nodes, in=64, hidden=16, heads=[4, 2], 8 classes.
    M = 2
    N = 256
    in_size = 64
    hidden_size = 16
    num_heads = [4, 2]
    out_size = 8

    key, kh, ka = jax.random.split(key, 3)
    h = jax.random.normal(kh, (N, in_size), jnp.float32)

    # Dense metapath-reachable adjacency matrices (dst x src) with self loops.
    adjs = (jax.random.uniform(ka, (M, N, N)) < 0.05).astype(jnp.float32)
    adjs = jnp.maximum(adjs, jnp.eye(N, dtype=jnp.float32)[None])

    layer_in_sizes = [in_size] + [hidden_size * num_heads[l - 1]
                                  for l in range(1, len(num_heads))]
    params = make_params(key, M, layer_in_sizes, hidden_size, num_heads, out_size)

    out = han_forward(adjs, h, params, num_heads, hidden_size)
    out = jax.block_until_ready(out)

    ref = _han_ref(adjs, h, params, num_heads, hidden_size)
    assert out.shape == (N, out_size), out.shape
    err = jnp.max(jnp.abs(out - ref))
    assert jnp.allclose(out, ref, rtol=3e-2, atol=3e-2), f"max abs err {err}"

    print("KERNEL_OK")
</pallas_src>

<mosaic_0001>
module attributes {stable_mosaic.version = 11 : i64} {
  func.func @_gat_proj_kernel(%arg0: i32, %arg1: i32, %arg2: memref<256x64xbf16, #tpu.memory_space<vmem>>, %arg3: memref<1x64x72xbf16, #tpu.memory_space<vmem>>, %arg4: memref<1x256x64xbf16, #tpu.memory_space<vmem>>, %arg5: memref<1x256x4xf32, #tpu.memory_space<vmem>>, %arg6: memref<1x256x4xf32, #tpu.memory_space<vmem>>) attributes {dimension_semantics = [#tpu.dimension_semantics<parallel>, #tpu.dimension_semantics<parallel>], iteration_bounds = array<i64: 2, 1>, scalar_prefetch = 0 : i64, scratch_operands = 0 : i64, tpu.core_type = #tpu.core_type<tc>, window_params = [{transform_indices = @transform_0, window_bounds = array<i64: 256, 64>}, {transform_indices = @transform_1, window_bounds = array<i64: 1, 64, 72>}, {transform_indices = @transform_2, window_bounds = array<i64: 1, 256, 64>}, {transform_indices = @transform_3, window_bounds = array<i64: 1, 256, 4>}, {transform_indices = @transform_4, window_bounds = array<i64: 1, 256, 4>}]} {
    %c0 = arith.constant 0 : index
    %c0_0 = arith.constant 0 : index
    %0 = vector.load %arg2[%c0, %c0_0] : memref<256x64xbf16, #tpu.memory_space<vmem>>, vector<256x64xbf16>
    %c0_1 = arith.constant 0 : index
    %c0_2 = arith.constant 0 : index
    %c0_3 = arith.constant 0 : index
    %1 = vector.load %arg3[%c0_1, %c0_2, %c0_3] : memref<1x64x72xbf16, #tpu.memory_space<vmem>>, vector<1x64x72xbf16>
    %2 = vector.shape_cast %1 : vector<1x64x72xbf16> to vector<64x72xbf16>
    %cst = arith.constant dense<0.000000e+00> : vector<256x72xf32>
    %3 = tpu.matmul %0, %2, %cst {dimension_numbers = #tpu.dot_dimension_numbers<[1], [0], [0], [1], [0, 0, 1, 1], [], []>} : vector<256x64xbf16>, vector<64x72xbf16>, vector<256x72xf32> -> vector<256x72xf32>
    %4 = vector.extract_strided_slice %3 {offsets = [0, 0], sizes = [256, 64], strides = [1, 1]} : vector<256x72xf32> to vector<256x64xf32>
    %5 = arith.truncf %4 : vector<256x64xf32> to vector<256x64xbf16>
    %c0_4 = arith.constant 0 : index
    %c0_5 = arith.constant 0 : index
    %c0_6 = arith.constant 0 : index
    %6 = vector.load %arg4[%c0_4, %c0_5, %c0_6] : memref<1x256x64xbf16, #tpu.memory_space<vmem>>, vector<1x256x64xbf16>
    %7 = vector.shape_cast %6 : vector<1x256x64xbf16> to vector<256x64xbf16>
    %8 = vector.shape_cast %5 : vector<256x64xbf16> to vector<1x256x64xbf16>
    tpu.vector_store %arg4[%c0_4, %c0_5, %c0_6], %8 {strides = array<i32>} : memref<1x256x64xbf16, #tpu.memory_space<vmem>>, vector<1x256x64xbf16>,
    %9 = vector.extract_strided_slice %3 {offsets = [0, 64], sizes = [256, 4], strides = [1, 1]} : vector<256x72xf32> to vector<256x4xf32>
    %c0_7 = arith.constant 0 : index
    %c0_8 = arith.constant 0 : index
    %c0_9 = arith.constant 0 : index
    %10 = vector.load %arg5[%c0_7, %c0_8, %c0_9] : memref<1x256x4xf32, #tpu.memory_space<vmem>>, vector<1x256x4xf32>
    %11 = vector.shape_cast %10 : vector<1x256x4xf32> to vector<256x4xf32>
    %12 = vector.shape_cast %9 : vector<256x4xf32> to vector<1x256x4xf32>
    tpu.vector_store %arg5[%c0_7, %c0_8, %c0_9], %12 {strides = array<i32>} : memref<1x256x4xf32, #tpu.memory_space<vmem>>, vector<1x256x4xf32>,
    %13 = vector.extract_strided_slice %3 {offsets = [0, 68], sizes = [256, 4], strides = [1, 1]} : vector<256x72xf32> to vector<256x4xf32>
    %c0_10 = arith.constant 0 : index
    %c0_11 = arith.constant 0 : index
    %c0_12 = arith.constant 0 : index
    %14 = vector.load %arg6[%c0_10, %c0_11, %c0_12] : memref<1x256x4xf32, #tpu.memory_space<vmem>>, vector<1x256x4xf32>
    %15 = vector.shape_cast %14 : vector<1x256x4xf32> to vector<256x4xf32>
    %16 = vector.shape_cast %13 : vector<256x4xf32> to vector<1x256x4xf32>
    tpu.vector_store %arg6[%c0_10, %c0_11, %c0_12], %16 {strides = array<i32>} : memref<1x256x4xf32, #tpu.memory_space<vmem>>, vector<1x256x4xf32>,
    return
  }
  func.func @transform_0(%arg0: i32, %arg1: i32) -> (i32, i32) {
    %c0_i32 = arith.constant 0 : i32
    %c0_i32_0 = arith.constant 0 : i32
    return %arg1, %c0_i32 : i32, i32
  }
  func.func @transform_1(%arg0: i32, %arg1: i32) -> (i32, i32, i32) {
    %c0_i32 = arith.constant 0 : i32
    %c0_i32_0 = arith.constant 0 : i32
    %c0_i32_1 = arith.constant 0 : i32
    return %arg0, %c0_i32, %c0_i32_0 : i32, i32, i32
  }
  func.func @transform_2(%arg0: i32, %arg1: i32) -> (i32, i32, i32) {
    %c0_i32 = arith.constant 0 : i32
    %c0_i32_0 = arith.constant 0 : i32
    return %arg0, %arg1, %c0_i32 : i32, i32, i32
  }
  func.func @transform_3(%arg0: i32, %arg1: i32) -> (i32, i32, i32) {
    %c0_i32 = arith.constant 0 : i32
    %c0_i32_0 = arith.constant 0 : i32
    return %arg0, %arg1, %c0_i32 : i32, i32, i32
  }
  func.func @transform_4(%arg0: i32, %arg1: i32) -> (i32, i32, i32) {
    %c0_i32 = arith.constant 0 : i32
    %c0_i32_0 = arith.constant 0 : i32
    return %arg0, %arg1, %c0_i32 : i32, i32, i32
  }
}

</mosaic_0001>

<llo_original>
// kernel: tpu_custom_call.1
$region0: #{tpu_custom_call.1}
  #allocation0 [shape = 'u32[]', space=smem, size = 0x4, offset = 0x4, fixed_abs, tag = 'smem constant byte address 0x4 - core index']
  #allocation1 [shape = 'u32[72,128]{1,0:T(1,128)}', space=vmem, size = 0x9000, scoped, tag = 'internal scratch']
  %s0 = inlined_call_operand.vmem [shape: bf16[256,64], index: 0, kind: input, shape index: {}]
  %s1 = inlined_call_operand.vmem [shape: bf16[2,64,72], index: 1, kind: input, shape index: {}]
  %s2 = inlined_call_operand.vmem [shape: bf16[2,256,64], index: 2, kind: output, shape index: {0}]
  %s3 = inlined_call_operand.vmem [shape: f32[2,256,4], index: 3, kind: output, shape index: {1}]
  %s4 = inlined_call_operand.vmem [shape: f32[2,256,4], index: 4, kind: output, shape index: {2}]
  %5 = xla_tuple %s2, %s3, %s4
  %s6 = sld [smem:[#allocation0]]
  $region57: #{tpu_custom_call.1} parent=0
    _
  %s8 = ssub.s32 1, %s6
  %s9 = scalar_select 0, %s8, %s6
  loop: start=0, step=1, limit=4
  $region2: #{tpu_custom_call.1} parent=0 // loop_pre_header
    _
  $region3: #{tpu_custom_call.1} parent=0 // loop_header
    %s11 = sphi 0, %s15
    %p12 = scmp.ge.s32.totalorder %s11, 4
    %s18 = sphi 0, %s30
    %s19 = sphi 0, %s26
    %s20 = sphi 0, %s18
    %s21 = sphi 0, %s19
    %s22 = sphi 0, %s20
    %s23 = sphi 0, %s21
    %s33 = sphi 0, %s35
    %s36 = sphi 0, %s33
    %s37 = sphi 0, %s36
    %s53 = sphi 0, %s37
    %s59 = sphi 0, %s61
    %s62 = sphi 0, %s59
    %s63 = sphi 0, %s62
    %s79 = sphi 0, %s63
    %s87 = sphi 0, %s89
    %s90 = sphi 0, %s87
    %s91 = sphi 0, %s90
    %s107 = sphi 0, %s91
    %s115 = sphi 0, %s117
    %s118 = sphi 0, %s115
    %s119 = sphi 0, %s118
    %s135 = sphi 0, %s119
    %s143 = sphi 0, %s145
    %s146 = sphi 0, %s143
    %s147 = sphi 0, %s146
    %s163 = sphi 0, %s147
  $region4: #{tpu_custom_call.1} parent=0 // loop_header_branch
    %14 = sbr.rel (%p12) target = $region8
  $region5: #{tpu_custom_call.1} parent=0 // loop_body
    %s16 = ssub.s32 %s11, 1
    %s17 = ssub.s32 %s11, 2
    %s24 = sadd.s32 1, %s19
    %p25 = scmp.ge.s32.totalorder %s24, 1
    %s26 = scalar_select %p25, 0, %s24
    %s27 = sadd.s32 1, %s18
    %s28 = scalar_select %p25, %s27, %s18
    %p29 = scmp.ge.s32.totalorder %s28, 2
    %s30 = scalar_select %p29, 0, %s28
    %s31 = ssub.s32 %s19, %s26
    %p32 = scmp.eq.s32.totalorder %s31, 0
    %s34 = sadd.s32 %s33, 1
    %s35 = scalar_select %p32, %s33, %s34
    %p38 = pneg %p32
    %p39 = scmp.eq.s32.totalorder %s11, 1
    %p40 = por %p38, %p39
    %p41 = scmp.ne.s32.totalorder %s33, %s36
    %p42 = scmp.eq.s32.totalorder %s11, 0
    %p43 = por %p41, %p42
    %p44 = scmp.ne.s32.totalorder %s33, %s36
    %p45 = scmp.eq.s32.totalorder %s16, 1
    %p46 = por %p44, %p45
    %p47 = scmp.ne.s32.totalorder %s36, %s37
    %p48 = scmp.eq.s32.totalorder %s16, 0
    %p49 = por %p47, %p48
    %p50 = scmp.ne.s32.totalorder %s36, %s37
    %p51 = scmp.eq.s32.totalorder %s17, 1
    %p52 = por %p50, %p51
    %p54 = scmp.ne.s32.totalorder %s37, %s53
    %p55 = scmp.eq.s32.totalorder %s17, 0
    %p56 = por %p54, %p55
    %s57 = ssub.s32 %s18, %s30
    %p58 = scmp.eq.s32.totalorder %s57, 0
    %s60 = sadd.s32 %s59, 1
    %s61 = scalar_select %p58, %s59, %s60
    %p64 = pneg %p58
    %p65 = scmp.eq.s32.totalorder %s11, 1
    %p66 = por %p64, %p65
    %p67 = scmp.ne.s32.totalorder %s59, %s62
    %p68 = scmp.eq.s32.totalorder %s11, 0
    %p69 = por %p67, %p68
    %p70 = scmp.ne.s32.totalorder %s59, %s62
    %p71 = scmp.eq.s32.totalorder %s16, 1
    %p72 = por %p70, %p71
    %p73 = scmp.ne.s32.totalorder %s62, %s63
    %p74 = scmp.eq.s32.totalorder %s16, 0
    %p75 = por %p73, %p74
    %p76 = scmp.ne.s32.totalorder %s62, %s63
    %p77 = scmp.eq.s32.totalorder %s17, 1
    %p78 = por %p76, %p77
    %p80 = scmp.ne.s32.totalorder %s63, %s79
    %p81 = scmp.eq.s32.totalorder %s17, 0
    %p82 = por %p80, %p81
    %s83 = ssub.s32 %s18, %s30
    %s84 = ssub.s32 %s19, %s26
    %s85 = sor.u32 %s83, %s84
    %p86 = scmp.eq.s32.totalorder %s85, 0
    %s88 = sadd.s32 %s87, 1
    %s89 = scalar_select %p86, %s87, %s88
    %p92 = pneg %p86
    %p93 = scmp.eq.s32.totalorder %s11, 1
    %p94 = por %p92, %p93
    %p95 = scmp.ne.s32.totalorder %s87, %s90
    %p96 = scmp.eq.s32.totalorder %s11, 0
    %p97 = por %p95, %p96
    %p98 = scmp.ne.s32.totalorder %s87, %s90
    %p99 = scmp.eq.s32.totalorder %s16, 1
    %p100 = por %p98, %p99
    %p101 = scmp.ne.s32.totalorder %s90, %s91
    %p102 = scmp.eq.s32.totalorder %s16, 0
    %p103 = por %p101, %p102
    %p104 = scmp.ne.s32.totalorder %s90, %s91
    %p105 = scmp.eq.s32.totalorder %s17, 1
    %p106 = por %p104, %p105
    %p108 = scmp.ne.s32.totalorder %s91, %s107
    %p109 = scmp.eq.s32.totalorder %s17, 0
    %p110 = por %p108, %p109
    %s111 = ssub.s32 %s18, %s30
    %s112 = ssub.s32 %s19, %s26
    %s113 = sor.u32 %s111, %s112
    %p114 = scmp.eq.s32.totalorder %s113, 0
    %s116 = sadd.s32 %s115, 1
    %s117 = scalar_select %p114, %s115, %s116
    %p120 = pneg %p114
    %p121 = scmp.eq.s32.totalorder %s11, 1
    %p122 = por %p120, %p121
    %p123 = scmp.ne.s32.totalorder %s115, %s118
    %p124 = scmp.eq.s32.totalorder %s11, 0
    %p125 = por %p123, %p124
    %p126 = scmp.ne.s32.totalorder %s115, %s118
    %p127 = scmp.eq.s32.totalorder %s16, 1
    %p128 = por %p126, %p127
    %p129 = scmp.ne.s32.totalorder %s118, %s119
    %p130 = scmp.eq.s32.totalorder %s16, 0
    %p131 = por %p129, %p130
    %p132 = scmp.ne.s32.totalorder %s118, %s119
    %p133 = scmp.eq.s32.totalorder %s17, 1
    %p134 = por %p132, %p133
    %p136 = scmp.ne.s32.totalorder %s119, %s135
    %p137 = scmp.eq.s32.totalorder %s17, 0
    %p138 = por %p136, %p137
    %s139 = ssub.s32 %s18, %s30
    %s140 = ssub.s32 %s19, %s26
    %s141 = sor.u32 %s139, %s140
    %p142 = scmp.eq.s32.totalorder %s141, 0
    %s144 = sadd.s32 %s143, 1
    %s145 = scalar_select %p142, %s143, %s144
    %p148 = pneg %p142
    %p149 = scmp.eq.s32.totalorder %s11, 1
    %p150 = por %p148, %p149
    %p151 = scmp.ne.s32.totalorder %s143, %s146
    %p152 = scmp.eq.s32.totalorder %s11, 0
    %p153 = por %p151, %p152
    %p154 = scmp.ne.s32.totalorder %s143, %s146
    %p155 = scmp.eq.s32.totalorder %s16, 1
    %p156 = por %p154, %p155
    %p157 = scmp.ne.s32.totalorder %s146, %s147
    %p158 = scmp.eq.s32.totalorder %s16, 0
    %p159 = por %p157, %p158
    %p160 = scmp.ne.s32.totalorder %s146, %s147
    %p161 = scmp.eq.s32.totalorder %s17, 1
    %p162 = por %p160, %p161
    %p164 = scmp.ne.s32.totalorder %s147, %s163
    %p165 = scmp.eq.s32.totalorder %s17, 0
    %p166 = por %p164, %p165
    %p167 = scmp.le.s32.totalorder 1, %s11
    %p168 = scmp.lt.s32.totalorder %s11, 3
    %p169 = pnand %p167, %p168
    %p170 = pneg %p169
    // Predicated region
    $region9: #{tpu_custom_call.1} parent=5 // pred_check
      _
    $region10: #{tpu_custom_call.1} parent=5 // pred_check_branch
      %172 = sbr.rel (%p169) target = $region12
    $region11: #{tpu_custom_call.1} parent=5 // pred_region
      %s173 = ssub.s32 %s11, 1
      // Predicated region
      $region13: #{tpu_custom_call.1} parent=11 // pred_check
        %p174 = pneg %p49
      $region14: #{tpu_custom_call.1} parent=11 // pred_check_branch
        %176 = sbr.rel (%p174) target = $region16
      $region15: #{tpu_custom_call.1} parent=11 // pred_region
        %s177 = smul.u32 32, %s21
        %p178 = scmp.lt.s32.totalorder %s177, 31
        %s179 = scalar_select %p178, %s177, 31
        %s180 = smul.addr %s179, 4
        %s181 = scalar_lea.vmem %s0, %s180
        %s182 = smul.u32 32, %s21
      $region16: #{tpu_custom_call.1} parent=11 // pred_fallthru
        _
    $region12: #{tpu_custom_call.1} parent=5 // pred_fallthru
      _
    %p183 = scmp.lt.s32.totalorder %s11, 2
    // Predicated region
    $region17: #{tpu_custom_call.1} parent=5 // pred_check
      %p184 = pneg %p183
    $region18: #{tpu_custom_call.1} parent=5 // pred_check_branch
      %186 = sbr.rel (%p184) target = $region20
    $region19: #{tpu_custom_call.1} parent=5 // pred_region
      // Predicated region
      $region21: #{tpu_custom_call.1} parent=19 // pred_check
        %p187 = pneg %p69
      $region22: #{tpu_custom_call.1} parent=19 // pred_check_branch
        %189 = sbr.rel (%p187) target = $region24
      $region23: #{tpu_custom_call.1} parent=19 // pred_region
        %p190 = scmp.lt.s32.totalorder %s18, 1
        %s191 = scalar_select %p190, %s18, 1
        %s192 = smul.addr %s191, 8
        %s193 = smul.addr %s192, 4
        %s194 = scalar_lea.vmem %s1, %s193
      $region24: #{tpu_custom_call.1} parent=19 // pred_fallthru
        _
    $region20: #{tpu_custom_call.1} parent=5 // pred_fallthru
      _
    %p195 = scmp.le.s32.totalorder 1, %s11
    %p196 = scmp.lt.s32.totalorder %s11, 3
    %p197 = pnand %p195, %p196
    %p198 = pneg %p197
    // Predicated region
    $region25: #{tpu_custom_call.1} parent=5 // pred_check
      _
    $region26: #{tpu_custom_call.1} parent=5 // pred_check_branch
      %200 = sbr.rel (%p197) target = $region28
    $region27: #{tpu_custom_call.1} parent=5 // pred_region
      %s201 = ssub.s32 %s11, 1
      %s202 = smul.u32 32, %s21
      %p203 = scmp.lt.s32.totalorder %s202, 31
      %s204 = scalar_select %p203, %s202, 31
      %s205 = smul.addr %s204, 4
      %s206 = scalar_lea.vmem %s0, %s205
      %p207 = pneg %p49
      %p208 = pneg %p46
      %p209 = scmp.lt.s32.totalorder %s20, 1
      %s210 = scalar_select %p209, %s20, 1
      %s211 = smul.addr %s210, 8
      %s212 = smul.addr %s211, 4
      %s213 = scalar_lea.vmem %s1, %s212
      %p214 = pneg %p75
      %p215 = pneg %p72
      %p216 = pneg %p103
      %p217 = pneg %p100
      %s218 = smul.u32 32, %s21
      %p219 = scmp.lt.s32.totalorder %s20, 1
      %s220 = scalar_select %p219, %s20, 1
      %p221 = scmp.lt.s32.totalorder %s218, 31
      %s222 = scalar_select %p221, %s218, 31
      %s223 = smul.addr %s220, 32
      %s224 = sadd.s32 %s222, %s223
      %s225 = smul.addr %s224, 4
      %s226 = scalar_lea.vmem %s2, %s225
      %p227 = pneg %p131
      %p228 = pneg %p128
      %s229 = smul.u32 32, %s21
      %p230 = scmp.lt.s32.totalorder %s20, 1
      %s231 = scalar_select %p230, %s20, 1
      %p232 = scmp.lt.s32.totalorder %s229, 31
      %s233 = scalar_select %p232, %s229, 31
      %s234 = smul.addr %s231, 32
      %s235 = sadd.s32 %s233, %s234
      %s236 = smul.addr %s235, 8
      %s237 = scalar_lea.vmem %s3, %s236
      %p238 = pneg %p159
      %p239 = pneg %p156
      %s240 = smul.u32 32, %s21
      %p241 = scmp.lt.s32.totalorder %s20, 1
      %s242 = scalar_select %p241, %s20, 1
      %p243 = scmp.lt.s32.totalorder %s240, 31
      %s244 = scalar_select %p243, %s240, 31
      %s245 = smul.addr %s242, 32
      %s246 = sadd.s32 %s244, %s245
      %s247 = smul.addr %s246, 8
      %s248 = scalar_lea.vmem %s4, %s247
      %s249 = smul.u32 32, %s21
      %p250 = scmp.lt.s32.totalorder %s249, 31
      %s251 = scalar_select %p250, %s249, 31
      %s252 = smul.addr %s251, 4
      %s253 = scalar_lea.vmem %s0, %s252
      %s254 = smul.u32 32, %s21
      %p255 = scmp.lt.s32.totalorder %s20, 1
      %s256 = scalar_select %p255, %s20, 1
      %s257 = smul.addr %s256, 8
      %s258 = smul.addr %s257, 4
      %s259 = scalar_lea.vmem %s1, %s258
      %s260 = smul.u32 32, %s21
      %p261 = scmp.lt.s32.totalorder %s20, 1
      %s262 = scalar_select %p261, %s20, 1
      %p263 = scmp.lt.s32.totalorder %s260, 31
      %s264 = scalar_select %p263, %s260, 31
      %s265 = smul.addr %s262, 32
      %s266 = sadd.s32 %s264, %s265
      %s267 = smul.addr %s266, 4
      %s268 = scalar_lea.vmem %s2, %s267
      %s269 = smul.u32 32, %s21
      %s270 = smul.u32 32, %s21
      %p271 = scmp.lt.s32.totalorder %s20, 1
      %s272 = scalar_select %p271, %s20, 1
      %p273 = scmp.lt.s32.totalorder %s270, 31
      %s274 = scalar_select %p273, %s270, 31
      %s275 = smul.addr %s272, 32
      %s276 = sadd.s32 %s274, %s275
      %s277 = smul.addr %s276, 8
      %s278 = scalar_lea.vmem %s3, %s277
      %s279 = smul.u32 32, %s21
      %s280 = smul.u32 32, %s21
      %p281 = scmp.lt.s32.totalorder %s20, 1
      %s282 = scalar_select %p281, %s20, 1
      %p283 = scmp.lt.s32.totalorder %s280, 31
      %s284 = scalar_select %p283, %s280, 31
      %s285 = smul.addr %s282, 32
      %s286 = sadd.s32 %s284, %s285
      %s287 = smul.addr %s286, 8
      %s288 = scalar_lea.vmem %s4, %s287
      %s289 = smul.u32 32, %s21
      %v291 = vld [vmem:[%s253] sm:$0xf]
      %v292 = vld [vmem:[%s253 + $0x4] sm:$0xf]
      %v293 = vld [vmem:[%s253 + $0x8] sm:$0xf]
      %v294 = vld [vmem:[%s253 + $0xc] sm:$0xf]
      %v295 = vld [vmem:[%s253 + $0x10] sm:$0xf]
      %v296 = vld [vmem:[%s253 + $0x14] sm:$0xf]
      %v297 = vld [vmem:[%s253 + $0x18] sm:$0xf]
      %v298 = vld [vmem:[%s253 + $0x1c] sm:$0xf]
      %v299 = vld [vmem:[%s253 + $0x20] sm:$0xf]
      %v300 = vld [vmem:[%s253 + $0x24] sm:$0xf]
      %v301 = vld [vmem:[%s253 + $0x28] sm:$0xf]
      %v302 = vld [vmem:[%s253 + $0x2c] sm:$0xf]
      %v303 = vld [vmem:[%s253 + $0x30] sm:$0xf]
      %v304 = vld [vmem:[%s253 + $0x34] sm:$0xf]
      %v305 = vld [vmem:[%s253 + $0x38] sm:$0xf]
      %v306 = vld [vmem:[%s253 + $0x3c] sm:$0xf]
      %v307 = vld [vmem:[%s253 + $0x40] sm:$0xf]
      %v308 = vld [vmem:[%s253 + $0x44] sm:$0xf]
      %v309 = vld [vmem:[%s253 + $0x48] sm:$0xf]
      %v310 = vld [vmem:[%s253 + $0x4c] sm:$0xf]
      %v311 = vld [vmem:[%s253 + $0x50] sm:$0xf]
      %v312 = vld [vmem:[%s253 + $0x54] sm:$0xf]
      %v313 = vld [vmem:[%s253 + $0x58] sm:$0xf]
      %v314 = vld [vmem:[%s253 + $0x5c] sm:$0xf]
      %v315 = vld [vmem:[%s253 + $0x60] sm:$0xf]
      %v316 = vld [vmem:[%s253 + $0x64] sm:$0xf]
      %v317 = vld [vmem:[%s253 + $0x68] sm:$0xf]
      %v318 = vld [vmem:[%s253 + $0x6c] sm:$0xf]
      %v319 = vld [vmem:[%s253 + $0x70] sm:$0xf]
      %v320 = vld [vmem:[%s253 + $0x74] sm:$0xf]
      %v321 = vld [vmem:[%s253 + $0x78] sm:$0xf]
      %v322 = vld [vmem:[%s253 + $0x7c] sm:$0xf]
      %v323 = vld [vmem:[%s259] sm:$0xf]
      %v324 = vld [vmem:[%s259 + $0x4] sm:$0xf]
      %v325 = vld [vmem:[%s259 + $0x8] sm:$0xf]
      %v326 = vld [vmem:[%s259 + $0xc] sm:$0xf]
      %v327 = vld [vmem:[%s259 + $0x10] sm:$0xf]
      %v328 = vld [vmem:[%s259 + $0x14] sm:$0xf]
      %v329 = vld [vmem:[%s259 + $0x18] sm:$0xf]
      %v330 = vld [vmem:[%s259 + $0x1c] sm:$0xf]
      %v363 = vunpack.c.l.b16 %v291
      %v364 = vunpack.c.l.b16 %v292
      %v365 = vunpack.c.l.b16 %v293
      %v366 = vunpack.c.l.b16 %v294
      %v367 = vunpack.c.l.b16 %v295
      %v368 = vunpack.c.l.b16 %v296
      %v369 = vunpack.c.l.b16 %v297
      %v370 = vunpack.c.l.b16 %v298
      %v371 = vunpack.c.l.b16 %v299
      %v372 = vunpack.c.l.b16 %v300
      %v373 = vunpack.c.l.b16 %v301
      %v374 = vunpack.c.l.b16 %v302
      %v375 = vunpack.c.l.b16 %v303
      %v376 = vunpack.c.l.b16 %v304
      %v377 = vunpack.c.l.b16 %v305
      %v378 = vunpack.c.l.b16 %v306
      %v379 = vunpack.c.l.b16 %v307
      %v380 = vunpack.c.l.b16 %v308
      %v381 = vunpack.c.l.b16 %v309
      %v382 = vunpack.c.l.b16 %v310
      %v383 = vunpack.c.l.b16 %v311
      %v384 = vunpack.c.l.b16 %v312
      %v385 = vunpack.c.l.b16 %v313
      %v386 = vunpack.c.l.b16 %v314
      %v387 = vunpack.c.l.b16 %v315
      %v388 = vunpack.c.l.b16 %v316
      %v389 = vunpack.c.l.b16 %v317
      %v390 = vunpack.c.l.b16 %v318
      %v391 = vunpack.c.l.b16 %v319
      %v392 = vunpack.c.l.b16 %v320
      %v393 = vunpack.c.l.b16 %v321
      %v394 = vunpack.c.l.b16 %v322
      %v395 = vpack.c.b16 %v364, %v363
      %v396 = vpack.c.b16 %v366, %v365
      %v397 = vpack.c.b16 %v368, %v367
      %v398 = vpack.c.b16 %v370, %v369
      %v399 = vpack.c.b16 %v372, %v371
      %v400 = vpack.c.b16 %v374, %v373
      %v401 = vpack.c.b16 %v376, %v375
      %v402 = vpack.c.b16 %v378, %v377
      %v403 = vpack.c.b16 %v380, %v379
      %v404 = vpack.c.b16 %v382, %v381
      %v405 = vpack.c.b16 %v384, %v383
      %v406 = vpack.c.b16 %v386, %v385
      %v407 = vpack.c.b16 %v388, %v387
      %v408 = vpack.c.b16 %v390, %v389
      %v409 = vpack.c.b16 %v392, %v391
      %v410 = vpack.c.b16 %v394, %v393
      %v419 = vunpack.c.l.b16 %v323
      %v420 = vunpack.c.l.b16 %v324
      %v421 = vunpack.c.l.b16 %v325
      %v422 = vunpack.c.l.b16 %v326
      %v423 = vunpack.c.l.b16 %v327
      %v424 = vunpack.c.l.b16 %v328
      %v425 = vunpack.c.l.b16 %v329
      %v426 = vunpack.c.l.b16 %v330
      %v427 = vpack.c.b16 %v420, %v419
      %v428 = vpack.c.b16 %v422, %v421
      %v429 = vpack.c.b16 %v424, %v423
      %v430 = vpack.c.b16 %v426, %v425
      %vm435 = vcmask 523264
      %v437 = vsel %vm435, %v395, 0
      %v440 = vsel %vm435, %v396, 0
      %v443 = vsel %vm435, %v397, 0
      %v446 = vsel %vm435, %v398, 0
      %v449 = vsel %vm435, %v399, 0
      %v452 = vsel %vm435, %v400, 0
      %v455 = vsel %vm435, %v401, 0
      %v458 = vsel %vm435, %v402, 0
      %v461 = vsel %vm435, %v403, 0
      %v464 = vsel %vm435, %v404, 0
      %v467 = vsel %vm435, %v405, 0
      %v470 = vsel %vm435, %v406, 0
      %v473 = vsel %vm435, %v407, 0
      %v476 = vsel %vm435, %v408, 0
      %v479 = vsel %vm435, %v409, 0
      %v482 = vsel %vm435, %v410, 0
      %484 = vmatpush.bf16.msra.mxu0 0
      %485 = vmatpush.bf16.msra.mxu0 0
      %486 = vmatpush.bf16.msra.mxu0 0
      %487 = vmatpush.bf16.msra.mxu0 0
      %488 = vmatpush.bf16.msra.mxu0 %v430
      %489 = vmatpush.bf16.msra.mxu0 %v429
      %490 = vmatpush.bf16.msra.mxu0 %v428
      %491 = vmatpush.bf16.msra.mxu0 %v427
      %492 = vmatmul.bf16.gmra.mxu0 %v437
      %v493 = vpop.f32.mrf.mxu0
      %v494 = vadd.f32 0.0, %v493
      %v495 = vpop.f32.mrf.mxu0
      %v496 = vadd.f32 0.0, %v495
      %497 = vmatmul.bf16.gmra.mxu0 %v440
      %v498 = vpop.f32.mrf.mxu0
      %v499 = vadd.f32 0.0, %v498
      %v500 = vpop.f32.mrf.mxu0
      %v501 = vadd.f32 0.0, %v500
      %502 = vmatmul.bf16.gmra.mxu0 %v443
      %v503 = vpop.f32.mrf.mxu0
      %v504 = vadd.f32 0.0, %v503
      %v505 = vpop.f32.mrf.mxu0
      %v506 = vadd.f32 0.0, %v505
      %507 = vmatmul.bf16.gmra.mxu0 %v446
      %v508 = vpop.f32.mrf.mxu0
      %v509 = vadd.f32 0.0, %v508
      %v510 = vpop.f32.mrf.mxu0
      %v511 = vadd.f32 0.0, %v510
      %512 = vmatmul.bf16.gmra.mxu0 %v449
      %v513 = vpop.f32.mrf.mxu0
      %v514 = vadd.f32 0.0, %v513
      %v515 = vpop.f32.mrf.mxu0
      %v516 = vadd.f32 0.0, %v515
      %517 = vmatmul.bf16.gmra.mxu0 %v452
      %v518 = vpop.f32.mrf.mxu0
      %v519 = vadd.f32 0.0, %v518
      %v520 = vpop.f32.mrf.mxu0
      %v521 = vadd.f32 0.0, %v520
      %522 = vmatmul.bf16.gmra.mxu0 %v455
      %v523 = vpop.f32.mrf.mxu0
      %v524 = vadd.f32 0.0, %v523
      %v525 = vpop.f32.mrf.mxu0
      %v526 = vadd.f32 0.0, %v525
      %527 = vmatmul.bf16.gmra.mxu0 %v458
      %v528 = vpop.f32.mrf.mxu0
      %v529 = vadd.f32 0.0, %v528
      %v530 = vpop.f32.mrf.mxu0
      %v531 = vadd.f32 0.0, %v530
      %532 = vmatmul.bf16.gmra.mxu0 %v461
      %v533 = vpop.f32.mrf.mxu0
      %v534 = vadd.f32 0.0, %v533
      %v535 = vpop.f32.mrf.mxu0
      %v536 = vadd.f32 0.0, %v535
      %537 = vmatmul.bf16.gmra.mxu0 %v464
      %v538 = vpop.f32.mrf.mxu0
      %v539 = vadd.f32 0.0, %v538
      %v540 = vpop.f32.mrf.mxu0
      %v541 = vadd.f32 0.0, %v540
      %542 = vmatmul.bf16.gmra.mxu0 %v467
      %v543 = vpop.f32.mrf.mxu0
      %v544 = vadd.f32 0.0, %v543
      %v545 = vpop.f32.mrf.mxu0
      %v546 = vadd.f32 0.0, %v545
      %547 = vmatmul.bf16.gmra.mxu0 %v470
      %v548 = vpop.f32.mrf.mxu0
      %v549 = vadd.f32 0.0, %v548
      %v550 = vpop.f32.mrf.mxu0
      %v551 = vadd.f32 0.0, %v550
      %552 = vmatmul.bf16.gmra.mxu0 %v473
      %v553 = vpop.f32.mrf.mxu0
      %v554 = vadd.f32 0.0, %v553
      %v555 = vpop.f32.mrf.mxu0
      %v556 = vadd.f32 0.0, %v555
      %557 = vmatmul.bf16.gmra.mxu0 %v476
      %v558 = vpop.f32.mrf.mxu0
      %v559 = vadd.f32 0.0, %v558
      %v560 = vpop.f32.mrf.mxu0
      %v561 = vadd.f32 0.0, %v560
      %562 = vmatmul.bf16.gmra.mxu0 %v479
      %v563 = vpop.f32.mrf.mxu0
      %v564 = vadd.f32 0.0, %v563
      %v565 = vpop.f32.mrf.mxu0
      %v566 = vadd.f32 0.0, %v565
      %567 = vmatmul.bf16.gmra.mxu0 %v482
      %v568 = vpop.f32.mrf.mxu0
      %v569 = vadd.f32 0.0, %v568
      %v570 = vpop.f32.mrf.mxu0
      %v571 = vadd.f32 0.0, %v570
      %572 = vdwg.mxu0
      %v573 = vpack.c.bf16 %v494, %v494
      %v574 = vpack.c.bf16 %v496, %v496
      %v575 = vpack.c.bf16 %v499, %v499
      %v576 = vpack.c.bf16 %v501, %v501
      %v577 = vpack.c.bf16 %v504, %v504
      %v578 = vpack.c.bf16 %v506, %v506
      %v579 = vpack.c.bf16 %v509, %v509
      %v580 = vpack.c.bf16 %v511, %v511
      %v581 = vpack.c.bf16 %v514, %v514
      %v582 = vpack.c.bf16 %v516, %v516
      %v583 = vpack.c.bf16 %v519, %v519
      %v584 = vpack.c.bf16 %v521, %v521
      %v585 = vpack.c.bf16 %v524, %v524
      %v586 = vpack.c.bf16 %v526, %v526
      %v587 = vpack.c.bf16 %v529, %v529
      %v588 = vpack.c.bf16 %v531, %v531
      %v589 = vpack.c.bf16 %v534, %v534
      %v590 = vpack.c.bf16 %v536, %v536
      %v591 = vpack.c.bf16 %v539, %v539
      %v592 = vpack.c.bf16 %v541, %v541
      %v593 = vpack.c.bf16 %v544, %v544
      %v594 = vpack.c.bf16 %v546, %v546
      %v595 = vpack.c.bf16 %v549, %v549
      %v596 = vpack.c.bf16 %v551, %v551
      %v597 = vpack.c.bf16 %v554, %v554
      %v598 = vpack.c.bf16 %v556, %v556
      %v599 = vpack.c.bf16 %v559, %v559
      %v600 = vpack.c.bf16 %v561, %v561
      %v601 = vpack.c.bf16 %v564, %v564
      %v602 = vpack.c.bf16 %v566, %v566
      %v603 = vpack.c.bf16 %v569, %v569
      %v604 = vpack.c.bf16 %v571, %v571
      %vm605 = vcmask 519168
      %606 = vst.msk [vmem:[%s268] sm:$0xf] %vm605, %v573
      %607 = vst.msk [vmem:[%s268 + $0x4] sm:$0xf] %vm605, %v574
      %608 = vst.msk [vmem:[%s268 + $0x8] sm:$0xf] %vm605, %v575
      %609 = vst.msk [vmem:[%s268 + $0xc] sm:$0xf] %vm605, %v576
      %610 = vst.msk [vmem:[%s268 + $0x10] sm:$0xf] %vm605, %v577
      %611 = vst.msk [vmem:[%s268 + $0x14] sm:$0xf] %vm605, %v578
      %612 = vst.msk [vmem:[%s268 + $0x18] sm:$0xf] %vm605, %v579
      %613 = vst.msk [vmem:[%s268 + $0x1c] sm:$0xf] %vm605, %v580
      %614 = vst.msk [vmem:[%s268 + $0x20] sm:$0xf] %vm605, %v581
      %615 = vst.msk [vmem:[%s268 + $0x24] sm:$0xf] %vm605, %v582
      %616 = vst.msk [vmem:[%s268 + $0x28] sm:$0xf] %vm605, %v583
      %617 = vst.msk [vmem:[%s268 + $0x2c] sm:$0xf] %vm605, %v584
      %618 = vst.msk [vmem:[%s268 + $0x30] sm:$0xf] %vm605, %v585
      %619 = vst.msk [vmem:[%s268 + $0x34] sm:$0xf] %vm605, %v586
      %620 = vst.msk [vmem:[%s268 + $0x38] sm:$0xf] %vm605, %v587
      %621 = vst.msk [vmem:[%s268 + $0x3c] sm:$0xf] %vm605, %v588
      %622 = vst.msk [vmem:[%s268 + $0x40] sm:$0xf] %vm605, %v589
      %623 = vst.msk [vmem:[%s268 + $0x44] sm:$0xf] %vm605, %v590
      %624 = vst.msk [vmem:[%s268 + $0x48] sm:$0xf] %vm605, %v591
      %625 = vst.msk [vmem:[%s268 + $0x4c] sm:$0xf] %vm605, %v592
      %626 = vst.msk [vmem:[%s268 + $0x50] sm:$0xf] %vm605, %v593
      %627 = vst.msk [vmem:[%s268 + $0x54] sm:$0xf] %vm605, %v594
      %628 = vst.msk [vmem:[%s268 + $0x58] sm:$0xf] %vm605, %v595
      %629 = vst.msk [vmem:[%s268 + $0x5c] sm:$0xf] %vm605, %v596
      %630 = vst.msk [vmem:[%s268 + $0x60] sm:$0xf] %vm605, %v597
      %631 = vst.msk [vmem:[%s268 + $0x64] sm:$0xf] %vm605, %v598
      %632 = vst.msk [vmem:[%s268 + $0x68] sm:$0xf] %vm605, %v599
      %633 = vst.msk [vmem:[%s268 + $0x6c] sm:$0xf] %vm605, %v600
      %634 = vst.msk [vmem:[%s268 + $0x70] sm:$0xf] %vm605, %v601
      %635 = vst.msk [vmem:[%s268 + $0x74] sm:$0xf] %vm605, %v602
      %636 = vst.msk [vmem:[%s268 + $0x78] sm:$0xf] %vm605, %v603
      %637 = vst.msk [vmem:[%s268 + $0x7c] sm:$0xf] %vm605, %v604
      %670 = vrot.lane.b32.xlu0 %v494, 64
      %v671 = vpop.permute.xlu0 %670
      %672 = vrot.lane.b32.xlu0 %v496, 64
      %v673 = vpop.permute.xlu0 %672
      %674 = vrot.lane.b32.xlu0 %v499, 64
      %v675 = vpop.permute.xlu0 %674
      %676 = vrot.lane.b32.xlu0 %v501, 64
      %v677 = vpop.permute.xlu0 %676
      %678 = vrot.lane.b32.xlu0 %v504, 64
      %v679 = vpop.permute.xlu0 %678
      %680 = vrot.lane.b32.xlu0 %v506, 64
      %v681 = vpop.permute.xlu0 %680
      %682 = vrot.lane.b32.xlu0 %v509, 64
      %v683 = vpop.permute.xlu0 %682
      %684 = vrot.lane.b32.xlu0 %v511, 64
      %v685 = vpop.permute.xlu0 %684
      %686 = vrot.lane.b32.xlu0 %v514, 64
      %v687 = vpop.permute.xlu0 %686
      %688 = vrot.lane.b32.xlu0 %v516, 64
      %v689 = vpop.permute.xlu0 %688
      %690 = vrot.lane.b32.xlu0 %v519, 64
      %v691 = vpop.permute.xlu0 %690
      %692 = vrot.lane.b32.xlu0 %v521, 64
      %v693 = vpop.permute.xlu0 %692
      %694 = vrot.lane.b32.xlu0 %v524, 64
      %v695 = vpop.permute.xlu0 %694
      %696 = vrot.lane.b32.xlu0 %v526, 64
      %v697 = vpop.permute.xlu0 %696
      %698 = vrot.lane.b32.xlu0 %v529, 64
      %v699 = vpop.permute.xlu0 %698
      %700 = vrot.lane.b32.xlu0 %v531, 64
      %v701 = vpop.permute.xlu0 %700
      %702 = vrot.lane.b32.xlu0 %v534, 64
      %v703 = vpop.permute.xlu0 %702
      %704 = vrot.lane.b32.xlu0 %v536, 64
      %v705 = vpop.permute.xlu0 %704
      %706 = vrot.lane.b32.xlu0 %v539, 64
      %v707 = vpop.permute.xlu0 %706
      %708 = vrot.lane.b32.xlu0 %v541, 64
      %v709 = vpop.permute.xlu0 %708
      %710 = vrot.lane.b32.xlu0 %v544, 64
      %v711 = vpop.permute.xlu0 %710
      %712 = vrot.lane.b32.xlu0 %v546, 64
      %v713 = vpop.permute.xlu0 %712
      %714 = vrot.lane.b32.xlu0 %v549, 64
      %v715 = vpop.permute.xlu0 %714
      %716 = vrot.lane.b32.xlu0 %v551, 64
      %v717 = vpop.permute.xlu0 %716
      %718 = vrot.lane.b32.xlu0 %v554, 64
      %v719 = vpop.permute.xlu0 %718
      %720 = vrot.lane.b32.xlu0 %v556, 64
      %v721 = vpop.permute.xlu0 %720
      %722 = vrot.lane.b32.xlu0 %v559, 64
      %v723 = vpop.permute.xlu0 %722
      %724 = vrot.lane.b32.xlu0 %v561, 64
      %v725 = vpop.permute.xlu0 %724
      %726 = vrot.lane.b32.xlu0 %v564, 64
      %v727 = vpop.permute.xlu0 %726
      %728 = vrot.lane.b32.xlu0 %v566, 64
      %v729 = vpop.permute.xlu0 %728
      %730 = vrot.lane.b32.xlu0 %v569, 64
      %v731 = vpop.permute.xlu0 %730
      %732 = vrot.lane.b32.xlu0 %v571, 64
      %v733 = vpop.permute.xlu0 %732
      %vm766 = vcmask 31744
      %767 = vst.msk [vmem:[%s278] sm:$0xff] %vm766, %v671
      %768 = vst.msk [vmem:[%s278 + $0x8] sm:$0xff] %vm766, %v673
      %769 = vst.msk [vmem:[%s278 + $0x10] sm:$0xff] %vm766, %v675
      %770 = vst.msk [vmem:[%s278 + $0x18] sm:$0xff] %vm766, %v677
      %771 = vst.msk [vmem:[%s278 + $0x20] sm:$0xff] %vm766, %v679
      %772 = vst.msk [vmem:[%s278 + $0x28] sm:$0xff] %vm766, %v681
      %773 = vst.msk [vmem:[%s278 + $0x30] sm:$0xff] %vm766, %v683
      %774 = vst.msk [vmem:[%s278 + $0x38] sm:$0xff] %vm766, %v685
      %775 = vst.msk [vmem:[%s278 + $0x40] sm:$0xff] %vm766, %v687
      %776 = vst.msk [vmem:[%s278 + $0x48] sm:$0xff] %vm766, %v689
      %777 = vst.msk [vmem:[%s278 + $0x50] sm:$0xff] %vm766, %v691
      %778 = vst.msk [vmem:[%s278 + $0x58] sm:$0xff] %vm766, %v693
      %779 = vst.msk [vmem:[%s278 + $0x60] sm:$0xff] %vm766, %v695
      %780 = vst.msk [vmem:[%s278 + $0x68] sm:$0xff] %vm766, %v697
      %781 = vst.msk [vmem:[%s278 + $0x70] sm:$0xff] %vm766, %v699
      %782 = vst.msk [vmem:[%s278 + $0x78] sm:$0xff] %vm766, %v701
      %783 = vst.msk [vmem:[%s278 + $0x80] sm:$0xff] %vm766, %v703
      %784 = vst.msk [vmem:[%s278 + $0x88] sm:$0xff] %vm766, %v705
      %785 = vst.msk [vmem:[%s278 + $0x90] sm:$0xff] %vm766, %v707
      %786 = vst.msk [vmem:[%s278 + $0x98] sm:$0xff] %vm766, %v709
      %787 = vst.msk [vmem:[%s278 + $0xa0] sm:$0xff] %vm766, %v711
      %788 = vst.msk [vmem:[%s278 + $0xa8] sm:$0xff] %vm766, %v713
      %789 = vst.msk [vmem:[%s278 + $0xb0] sm:$0xff] %vm766, %v715
      %790 = vst.msk [vmem:[%s278 + $0xb8] sm:$0xff] %vm766, %v717
      %791 = vst.msk [vmem:[%s278 + $0xc0] sm:$0xff] %vm766, %v719
      %792 = vst.msk [vmem:[%s278 + $0xc8] sm:$0xff] %vm766, %v721
      %793 = vst.msk [vmem:[%s278 + $0xd0] sm:$0xff] %vm766, %v723
      %794 = vst.msk [vmem:[%s278 + $0xd8] sm:$0xff] %vm766, %v725
      %795 = vst.msk [vmem:[%s278 + $0xe0] sm:$0xff] %vm766, %v727
      %796 = vst.msk [vmem:[%s278 + $0xe8] sm:$0xff] %vm766, %v729
      %797 = vst.msk [vmem:[%s278 + $0xf0] sm:$0xff] %vm766, %v731
      %798 = vst.msk [vmem:[%s278 + $0xf8] sm:$0xff] %vm766, %v733
      %799 = vrot.lane.b32.xlu0 %v494, 60
      %v800 = vpop.permute.xlu0 %799
      %801 = vrot.lane.b32.xlu0 %v496, 60
      %v802 = vpop.permute.xlu0 %801
      %803 = vrot.lane.b32.xlu0 %v499, 60
      %v804 = vpop.permute.xlu0 %803
      %805 = vrot.lane.b32.xlu0 %v501, 60
      %v806 = vpop.permute.xlu0 %805
      %807 = vrot.lane.b32.xlu0 %v504, 60
      %v808 = vpop.permute.xlu0 %807
      %809 = vrot.lane.b32.xlu0 %v506, 60
      %v810 = vpop.permute.xlu0 %809
      %811 = vrot.lane.b32.xlu0 %v509, 60
      %v812 = vpop.permute.xlu0 %811
      %813 = vrot.lane.b32.xlu0 %v511, 60
      %v814 = vpop.permute.xlu0 %813
      %815 = vrot.lane.b32.xlu0 %v514, 60
      %v816 = vpop.permute.xlu0 %815
      %817 = vrot.lane.b32.xlu0 %v516, 60
      %v818 = vpop.permute.xlu0 %817
      %819 = vrot.lane.b32.xlu0 %v519, 60
      %v820 = vpop.permute.xlu0 %819
      %821 = vrot.lane.b32.xlu0 %v521, 60
      %v822 = vpop.permute.xlu0 %821
      %823 = vrot.lane.b32.xlu0 %v524, 60
      %v824 = vpop.permute.xlu0 %823
      %825 = vrot.lane.b32.xlu0 %v526, 60
      %v826 = vpop.permute.xlu0 %825
      %827 = vrot.lane.b32.xlu0 %v529, 60
      %v828 = vpop.permute.xlu0 %827
      %829 = vrot.lane.b32.xlu0 %v531, 60
      %v830 = vpop.permute.xlu0 %829
      %831 = vrot.lane.b32.xlu0 %v534, 60
      %v832 = vpop.permute.xlu0 %831
      %833 = vrot.lane.b32.xlu0 %v536, 60
      %v834 = vpop.permute.xlu0 %833
      %835 = vrot.lane.b32.xlu0 %v539, 60
      %v836 = vpop.permute.xlu0 %835
      %837 = vrot.lane.b32.xlu0 %v541, 60
      %v838 = vpop.permute.xlu0 %837
      %839 = vrot.lane.b32.xlu0 %v544, 60
      %v840 = vpop.permute.xlu0 %839
      %841 = vrot.lane.b32.xlu0 %v546, 60
      %v842 = vpop.permute.xlu0 %841
      %843 = vrot.lane.b32.xlu0 %v549, 60
      %v844 = vpop.permute.xlu0 %843
      %845 = vrot.lane.b32.xlu0 %v551, 60
      %v846 = vpop.permute.xlu0 %845
      %847 = vrot.lane.b32.xlu0 %v554, 60
      %v848 = vpop.permute.xlu0 %847
      %849 = vrot.lane.b32.xlu0 %v556, 60
      %v850 = vpop.permute.xlu0 %849
      %851 = vrot.lane.b32.xlu0 %v559, 60
      %v852 = vpop.permute.xlu0 %851
      %853 = vrot.lane.b32.xlu0 %v561, 60
      %v854 = vpop.permute.xlu0 %853
      %855 = vrot.lane.b32.xlu0 %v564, 60
      %v856 = vpop.permute.xlu0 %855
      %857 = vrot.lane.b32.xlu0 %v566, 60
      %v858 = vpop.permute.xlu0 %857
      %859 = vrot.lane.b32.xlu0 %v569, 60
      %v860 = vpop.permute.xlu0 %859
      %861 = vrot.lane.b32.xlu0 %v571, 60
      %v862 = vpop.permute.xlu0 %861
      %895 = vst.msk [vmem:[%s288] sm:$0xff] %vm766, %v800
      %896 = vst.msk [vmem:[%s288 + $0x8] sm:$0xff] %vm766, %v802
      %897 = vst.msk [vmem:[%s288 + $0x10] sm:$0xff] %vm766, %v804
      %898 = vst.msk [vmem:[%s288 + $0x18] sm:$0xff] %vm766, %v806
      %899 = vst.msk [vmem:[%s288 + $0x20] sm:$0xff] %vm766, %v808
      %900 = vst.msk [vmem:[%s288 + $0x28] sm:$0xff] %vm766, %v810
      %901 = vst.msk [vmem:[%s288 + $0x30] sm:$0xff] %vm766, %v812
      %902 = vst.msk [vmem:[%s288 + $0x38] sm:$0xff] %vm766, %v814
      %903 = vst.msk [vmem:[%s288 + $0x40] sm:$0xff] %vm766, %v816
      %904 = vst.msk [vmem:[%s288 + $0x48] sm:$0xff] %vm766, %v818
      %905 = vst.msk [vmem:[%s288 + $0x50] sm:$0xff] %vm766, %v820
      %906 = vst.msk [vmem:[%s288 + $0x58] sm:$0xff] %vm766, %v822
      %907 = vst.msk [vmem:[%s288 + $0x60] sm:$0xff] %vm766, %v824
      %908 = vst.msk [vmem:[%s288 + $0x68] sm:$0xff] %vm766, %v826
      %909 = vst.msk [vmem:[%s288 + $0x70] sm:$0xff] %vm766, %v828
      %910 = vst.msk [vmem:[%s288 + $0x78] sm:$0xff] %vm766, %v830
      %911 = vst.msk [vmem:[%s288 + $0x80] sm:$0xff] %vm766, %v832
      %912 = vst.msk [vmem:[%s288 + $0x88] sm:$0xff] %vm766, %v834
      %913 = vst.msk [vmem:[%s288 + $0x90] sm:$0xff] %vm766, %v836
      %914 = vst.msk [vmem:[%s288 + $0x98] sm:$0xff] %vm766, %v838
      %915 = vst.msk [vmem:[%s288 + $0xa0] sm:$0xff] %vm766, %v840
      %916 = vst.msk [vmem:[%s288 + $0xa8] sm:$0xff] %vm766, %v842
      %917 = vst.msk [vmem:[%s288 + $0xb0] sm:$0xff] %vm766, %v844
      %918 = vst.msk [vmem:[%s288 + $0xb8] sm:$0xff] %vm766, %v846
      %919 = vst.msk [vmem:[%s288 + $0xc0] sm:$0xff] %vm766, %v848
      %920 = vst.msk [vmem:[%s288 + $0xc8] sm:$0xff] %vm766, %v850
      %921 = vst.msk [vmem:[%s288 + $0xd0] sm:$0xff] %vm766, %v852
      %922 = vst.msk [vmem:[%s288 + $0xd8] sm:$0xff] %vm766, %v854
      %923 = vst.msk [vmem:[%s288 + $0xe0] sm:$0xff] %vm766, %v856
      %924 = vst.msk [vmem:[%s288 + $0xe8] sm:$0xff] %vm766, %v858
      %925 = vst.msk [vmem:[%s288 + $0xf0] sm:$0xff] %vm766, %v860
      %926 = vst.msk [vmem:[%s288 + $0xf8] sm:$0xff] %vm766, %v862
      %s927 = smul.u32 32, %s21
      %p928 = scmp.lt.s32.totalorder %s20, 1
      %s929 = scalar_select %p928, %s20, 1
      %p930 = scmp.lt.s32.totalorder %s927, 31
      %s931 = scalar_select %p930, %s927, 31
      %s932 = smul.addr %s929, 32
      %s933 = sadd.s32 %s931, %s932
      %s934 = smul.addr %s933, 4
      %s935 = scalar_lea.vmem %s2, %s934
      %s936 = smul.u32 32, %s21
      %p937 = scmp.lt.s32.totalorder %s20, 1
      %s938 = scalar_select %p937, %s20, 1
      %p939 = scmp.lt.s32.totalorder %s936, 31
      %s940 = scalar_select %p939, %s936, 31
      %s941 = smul.addr %s938, 32
      %s942 = sadd.s32 %s940, %s941
      %s943 = smul.addr %s942, 8
      %s944 = scalar_lea.vmem %s3, %s943
      %s945 = smul.u32 32, %s21
      %p946 = scmp.lt.s32.totalorder %s20, 1
      %s947 = scalar_select %p946, %s20, 1
      %p948 = scmp.lt.s32.totalorder %s945, 31
      %s949 = scalar_select %p948, %s945, 31
      %s950 = smul.addr %s947, 32
      %s951 = sadd.s32 %s949, %s950
      %s952 = smul.addr %s951, 8
      %s953 = scalar_lea.vmem %s4, %s952
      // Predicated region
      $region29: #{tpu_custom_call.1} parent=27 // pred_check
        %p954 = pneg %p100
      $region30: #{tpu_custom_call.1} parent=27 // pred_check_branch
        %956 = sbr.rel (%p954) target = $region32
      $region31: #{tpu_custom_call.1} parent=27 // pred_region
        %s957 = smul.u32 32, %s21
      $region32: #{tpu_custom_call.1} parent=27 // pred_fallthru
        _
      // Predicated region
      $region33: #{tpu_custom_call.1} parent=27 // pred_check
        %p958 = pneg %p128
      $region34: #{tpu_custom_call.1} parent=27 // pred_check_branch
        %960 = sbr.rel (%p958) target = $region36
      $region35: #{tpu_custom_call.1} parent=27 // pred_region
        %s961 = smul.u32 32, %s21
      $region36: #{tpu_custom_call.1} parent=27 // pred_fallthru
        _
      // Predicated region
      $region37: #{tpu_custom_call.1} parent=27 // pred_check
        %p962 = pneg %p156
      $region38: #{tpu_custom_call.1} parent=27 // pred_check_branch
        %964 = sbr.rel (%p962) target = $region40
      $region39: #{tpu_custom_call.1} parent=27 // pred_region
        %s965 = smul.u32 32, %s21
      $region40: #{tpu_custom_call.1} parent=27 // pred_fallthru
        _
    $region28: #{tpu_custom_call.1} parent=5 // pred_fallthru
      _
    %p966 = scmp.le.s32.totalorder 2, %s11
    // Predicated region
    $region41: #{tpu_custom_call.1} parent=5 // pred_check
      %p967 = pneg %p966
    $region42: #{tpu_custom_call.1} parent=5 // pred_check_branch
      %969 = sbr.rel (%p967) target = $region44
    $region43: #{tpu_custom_call.1} parent=5 // pred_region
      %s970 = ssub.s32 %s11, 2
      // Predicated region
      $region45: #{tpu_custom_call.1} parent=43 // pred_check
        %p971 = pneg %p106
      $region46: #{tpu_custom_call.1} parent=43 // pred_check_branch
        %973 = sbr.rel (%p971) target = $region48
      $region47: #{tpu_custom_call.1} parent=43 // pred_region
        %s974 = smul.u32 32, %s23
        %p975 = scmp.lt.s32.totalorder %s22, 1
        %s976 = scalar_select %p975, %s22, 1
        %p977 = scmp.lt.s32.totalorder %s974, 31
        %s978 = scalar_select %p977, %s974, 31
        %s979 = smul.addr %s976, 32
        %s980 = sadd.s32 %s978, %s979
        %s981 = smul.addr %s980, 4
        %s982 = scalar_lea.vmem %s2, %s981
      $region48: #{tpu_custom_call.1} parent=43 // pred_fallthru
        _
      // Predicated region
      $region49: #{tpu_custom_call.1} parent=43 // pred_check
        %p983 = pneg %p134
      $region50: #{tpu_custom_call.1} parent=43 // pred_check_branch
        %985 = sbr.rel (%p983) target = $region52
      $region51: #{tpu_custom_call.1} parent=43 // pred_region
        %s986 = smul.u32 32, %s23
        %p987 = scmp.lt.s32.totalorder %s22, 1
        %s988 = scalar_select %p987, %s22, 1
        %p989 = scmp.lt.s32.totalorder %s986, 31
        %s990 = scalar_select %p989, %s986, 31
        %s991 = smul.addr %s988, 32
        %s992 = sadd.s32 %s990, %s991
        %s993 = smul.addr %s992, 8
        %s994 = scalar_lea.vmem %s3, %s993
      $region52: #{tpu_custom_call.1} parent=43 // pred_fallthru
        _
      // Predicated region
      $region53: #{tpu_custom_call.1} parent=43 // pred_check
        %p995 = pneg %p162
      $region54: #{tpu_custom_call.1} parent=43 // pred_check_branch
        %997 = sbr.rel (%p995) target = $region56
      $region55: #{tpu_custom_call.1} parent=43 // pred_region
        %s998 = smul.u32 32, %s23
        %p999 = scmp.lt.s32.totalorder %s22, 1
        %s1000 = scalar_select %p999, %s22, 1
        %p1001 = scmp.lt.s32.totalorder %s998, 31
        %s1002 = scalar_select %p1001, %s998, 31
        %s1003 = smul.addr %s1000, 32
        %s1004 = sadd.s32 %s1002, %s1003
        %s1005 = smul.addr %s1004, 8
        %s1006 = scalar_lea.vmem %s4, %s1005
      $region56: #{tpu_custom_call.1} parent=43 // pred_fallthru
        _
    $region44: #{tpu_custom_call.1} parent=5 // pred_fallthru
      _
  $region6: #{tpu_custom_call.1} parent=0 // loop_footer
    %s15 = sadd.s32 1, %s11
  $region7: #{tpu_custom_call.1} parent=0 // loop_footer_branch
    %10 = sbr.rel target = $region3
  $region8: #{tpu_custom_call.1} parent=0 // loop_exit
    _

</llo_original>
